<compile_context>
chip_gen: v7x
topology: tpu7x:2x2x1
jax: 0.10.0
libtpu: 0.0.40
codegen_flags: <defaults>
</compile_context>

<pallas_src>
import functools

import jax
import jax.numpy as jnp
from jax.experimental import pallas as pl
from jax.experimental.pallas import tpu as pltpu


def _round_up(x, m):
    return ((x + m - 1) // m) * m


def _device_budgets():
    """Per-generation (logits-tile byte budget [f32-equivalent], scoped-VMEM limit)."""
    try:
        kind = jax.devices()[0].device_kind.lower()
    except Exception:  # pragma: no cover - device query should not fail on TPU
        kind = ""
    if "v5" in kind or "v6" in kind:
        # 128 MiB physical VMEM: large tiles + generous scoped limit.
        return 8 * 1024 * 1024, 64 * 1024 * 1024
    # v7x (64 MiB physical / 32 MiB default scoped) and unknown chips: conservative.
    return 4 * 1024 * 1024, 48 * 1024 * 1024


def _row_focal_losses(logits_ref, targets_ref, *, alpha, gamma):
    """Per-row focal loss for one (tile_n, C) logits tile -> (tile_n, 1) f32."""
    x = logits_ref[...].astype(jnp.float32)                  # (tile_n, C)
    t = targets_ref[...]                                     # (tile_n, 1) int32

    # Numerically stable log-sum-exp per row.
    m = jnp.max(x, axis=-1, keepdims=True)                   # (tile_n, 1)
    z = x - m
    sum_ez = jnp.sum(jnp.exp(z), axis=-1, keepdims=True)     # (tile_n, 1)
    lse = jnp.log(sum_ez)

    # Target logit via a masked lane reduce; the (1, C) iota broadcasts against
    # the (tile_n, 1) targets (no full (tile_n, C) int tile materialized).
    col = jax.lax.broadcasted_iota(jnp.int32, (1, x.shape[-1]), 1)
    z_t = jnp.max(jnp.where(col == t, z, -jnp.inf), axis=-1, keepdims=True)
    ce = lse - z_t                                            # (tile_n, 1)

    # pt = exp(-ce): exact, one EUP op (no approx reciprocal needed).
    pt = jnp.exp(-ce)
    one_m_pt = jnp.maximum(1.0 - pt, 0.0)

    g = float(gamma)
    if g == 0.0:
        mod = jnp.ones_like(one_m_pt)
    elif g == 1.0:
        mod = one_m_pt
    elif g == 2.0:
        mod = one_m_pt * one_m_pt             # avoid float-exponent pow (exp+log)
    else:
        mod = one_m_pt ** jnp.float32(g)

    return jnp.float32(alpha) * mod * ce                      # (tile_n, 1)


def _focal_sum_kernel(logits_ref, targets_ref, out_ref, *, alpha, gamma,
                      n_rows, tile_n):
    """reduction='mean'/'sum': per-tile partial sum, written as a (1,8,128) broadcast."""
    i = pl.program_id(0)
    f_loss = _row_focal_losses(logits_ref, targets_ref, alpha=alpha, gamma=gamma)
    # Zero ragged padding rows (select AFTER computing, so inf/nan never propagates).
    row = jax.lax.broadcasted_iota(jnp.int32, f_loss.shape, 0) + i * tile_n
    f_loss = jnp.where(row < n_rows, f_loss, 0.0)
    tile_sum = jnp.sum(f_loss, keepdims=True)                 # (1, 1)
    out_ref[...] = jnp.broadcast_to(tile_sum, out_ref.shape)


def _focal_rows_kernel(logits_ref, targets_ref, loss_ref, *, alpha, gamma,
                       n_rows, tile_n):
    """reduction='none': per-row losses."""
    i = pl.program_id(0)
    f_loss = _row_focal_losses(logits_ref, targets_ref, alpha=alpha, gamma=gamma)
    row = jax.lax.broadcasted_iota(jnp.int32, f_loss.shape, 0) + i * tile_n
    loss_ref[...] = jnp.where(row < n_rows, f_loss, 0.0)


def focal_loss(logits, targets, alpha=1.0, gamma=2.0, reduction="mean",
               tile_n=None):
    """Pallas implementation of FocalLoss.forward for 2-D logits.

    logits: (N, C) float array (f32 or bf16 -- bf16 ingestion halves HBM traffic),
    targets: (N,) integer class indices in [0, C).
    reduction: 'mean' | 'sum' | 'none'.
    """
    n, c = logits.shape
    itemsize = jnp.dtype(logits.dtype).itemsize
    sub = max(8, 32 // itemsize)              # sublane multiple: 8 (f32) / 16 (bf16)
    tile_budget, vmem_limit = _device_budgets()

    if tile_n is None:
        # Pure byte-budget tiling (f32-equivalent bytes so the in-kernel upcast and
        # intermediates are accounted for).  No hard 1024-row cap.
        tile_n = max(sub, tile_budget // max(c * 4, 1))
        # >= 2 grid steps whenever the batch permits so both v7x TensorCores get work.
        if n > sub:
            tile_n = min(tile_n, pl.cdiv(n, 2))
    tile_n = max(sub, min(_round_up(tile_n, sub), _round_up(n, sub)))
    num_tiles = pl.cdiv(n, tile_n)

    t2 = targets.astype(jnp.int32).reshape(n, 1)
    compiler_params = pltpu.CompilerParams(
        dimension_semantics=("parallel",),                    # 2 TCs on v7x
        vmem_limit_bytes=vmem_limit,
    )

    if reduction in ("mean", "sum"):
        kernel = functools.partial(_focal_sum_kernel, alpha=float(alpha),
                                   gamma=float(gamma), n_rows=n, tile_n=tile_n)
        partials = pl.pallas_call(
            kernel,
            out_shape=jax.ShapeDtypeStruct((num_tiles, 8, 128), jnp.float32),
            grid=(num_tiles,),
            in_specs=[
                pl.BlockSpec((tile_n, c), lambda i: (i, 0)),   # logits tile
                pl.BlockSpec((tile_n, 1), lambda i: (i, 0)),   # targets tile
            ],
            out_specs=pl.BlockSpec((1, 8, 128), lambda i: (i, 0, 0)),
            compiler_params=compiler_params,
        )(logits, t2)
        total = jnp.sum(partials[:, 0, 0])
        if reduction == "mean":
            return total / jnp.float32(n)
        return total

    # reduction == 'none': per-row losses.
    # TODO(synk): lane-dense ((num_tiles, tile_n)) output would avoid masked
    # vst.msk stores here; the hot mean/sum path already sidesteps the (N,1)
    # writeback entirely, so the column output is kept for this cold path.
    kernel = functools.partial(_focal_rows_kernel, alpha=float(alpha),
                               gamma=float(gamma), n_rows=n, tile_n=tile_n)
    per_row = pl.pallas_call(
        kernel,
        out_shape=jax.ShapeDtypeStruct((n, 1), jnp.float32),
        grid=(num_tiles,),
        in_specs=[
            pl.BlockSpec((tile_n, c), lambda i: (i, 0)),
            pl.BlockSpec((tile_n, 1), lambda i: (i, 0)),
        ],
        out_specs=pl.BlockSpec((tile_n, 1), lambda i: (i, 0)),
        compiler_params=compiler_params,
    )(logits, t2)
    return per_row[:, 0]


def _focal_loss_ref(logits, targets, alpha=1.0, gamma=2.0, reduction="mean"):
    # Pure-JAX reference for verification.
    logp = jax.nn.log_softmax(logits.astype(jnp.float32), axis=-1)
    ce = -jnp.take_along_axis(logp, targets[:, None].astype(jnp.int32), axis=-1)[:, 0]
    pt = jnp.exp(-ce)
    f = alpha * (1.0 - pt) ** gamma * ce
    if reduction == "mean":
        return jnp.mean(f)
    if reduction == "sum":
        return jnp.sum(f)
    return f


if __name__ == "__main__":
    key = jax.random.PRNGKey(0)
    k1, k2, k3, k4, k5, k6, k7, k8 = jax.random.split(key, 8)

    # Small case: batch=16, num_classes=32 (f32), mean + sum reductions.
    N, C = 16, 32
    logits = jax.random.normal(k1, (N, C), dtype=jnp.float32)
    targets = jax.random.randint(k2, (N,), 0, C, dtype=jnp.int32)

    loss = jax.block_until_ready(focal_loss(logits, targets, 1.0, 2.0, "mean"))
    ref = _focal_loss_ref(logits, targets, 1.0, 2.0, "mean")
    assert jnp.allclose(loss, ref, atol=2e-3, rtol=2e-3), (loss, ref)

    loss_sum = jax.block_until_ready(focal_loss(logits, targets, 0.5, 2.0, "sum"))
    ref_sum = _focal_loss_ref(logits, targets, 0.5, 2.0, "sum")
    assert jnp.allclose(loss_sum, ref_sum, atol=2e-3, rtol=2e-3), (loss_sum, ref_sum)

    # Multi-tile + ragged last tile: N not a multiple of tile_n (explicit tile size).
    N2, C2, T2 = 200, 96, 64
    logits2 = jax.random.normal(k3, (N2, C2), dtype=jnp.float32)
    targets2 = jax.random.randint(k4, (N2,), 0, C2, dtype=jnp.int32)
    loss2 = jax.block_until_ready(focal_loss(logits2, targets2, 1.0, 2.0, "mean",
                                             tile_n=T2))
    ref2 = _focal_loss_ref(logits2, targets2, 1.0, 2.0, "mean")
    assert jnp.allclose(loss2, ref2, atol=2e-3, rtol=2e-3), (loss2, ref2)

    # bf16 ingestion path (no wrapper pre-cast; kernel upcasts each tile).
    N3, C3 = 64, 256
    logits3 = jax.random.normal(k5, (N3, C3), dtype=jnp.bfloat16)
    targets3 = jax.random.randint(k6, (N3,), 0, C3, dtype=jnp.int32)
    loss3 = jax.block_until_ready(focal_loss(logits3, targets3, 1.0, 2.0, "mean"))
    ref3 = _focal_loss_ref(logits3, targets3, 1.0, 2.0, "mean")
    assert jnp.allclose(loss3, ref3, atol=2e-3, rtol=2e-3), (loss3, ref3)

    # reduction='none' path (per-row losses), ragged multi-tile.
    N4, C4 = 40, 32
    logits4 = jax.random.normal(k7, (N4, C4), dtype=jnp.float32)
    targets4 = jax.random.randint(k8, (N4,), 0, C4, dtype=jnp.int32)
    loss4 = jax.block_until_ready(focal_loss(logits4, targets4, 1.0, 2.0, "none"))
    ref4 = _focal_loss_ref(logits4, targets4, 1.0, 2.0, "none")
    assert loss4.shape == (N4,)
    assert jnp.allclose(loss4, ref4, atol=2e-3, rtol=2e-3), (loss4, ref4)

    print("KERNEL_OK")
</pallas_src>

<mosaic_0001>
module attributes {stable_mosaic.version = 11 : i64} {
  func.func @_focal_sum_kernel(%arg0: i32, %arg1: memref<8x32xf32, #tpu.memory_space<vmem>>, %arg2: memref<8x1xi32, #tpu.memory_space<vmem>>, %arg3: memref<1x8x128xf32, #tpu.memory_space<vmem>>) attributes {dimension_semantics = [#tpu.dimension_semantics<parallel>], iteration_bounds = array<i64: 2>, scalar_prefetch = 0 : i64, scratch_operands = 0 : i64, tpu.core_type = #tpu.core_type<tc>, window_params = [{transform_indices = @transform_0, window_bounds = array<i64: 8, 32>}, {transform_indices = @transform_1, window_bounds = array<i64: 8, 1>}, {transform_indices = @transform_2, window_bounds = array<i64: 1, 8, 128>}]} {
    %c0 = arith.constant 0 : index
    %c0_0 = arith.constant 0 : index
    %0 = vector.load %arg1[%c0, %c0_0] : memref<8x32xf32, #tpu.memory_space<vmem>>, vector<8x32xf32>
    %c0_1 = arith.constant 0 : index
    %c0_2 = arith.constant 0 : index
    %1 = vector.load %arg2[%c0_1, %c0_2] : memref<8x1xi32, #tpu.memory_space<vmem>>, vector<8x1xi32>
    %cst = arith.constant dense<0xFF800000> : vector<8xf32>
    %2 = vector.multi_reduction <maximumf>, %0, %cst [1] : vector<8x32xf32> to vector<8xf32>
    %3 = vector.shape_cast %2 : vector<8xf32> to vector<8x1xf32>
    %4 = vector.broadcast %3 : vector<8x1xf32> to vector<8x32xf32>
    %5 = arith.subf %0, %4 : vector<8x32xf32>
    %6 = math.exp %5 : vector<8x32xf32>
    %cst_3 = arith.constant dense<0.000000e+00> : vector<8xf32>
    %7 = vector.multi_reduction <add>, %6, %cst_3 [1] : vector<8x32xf32> to vector<8xf32>
    %8 = vector.shape_cast %7 : vector<8xf32> to vector<8x1xf32>
    %9 = math.log %8 : vector<8x1xf32>
    %10 = tpu.iota {dimensions = array<i32: 1>} : vector<1x32xi32>
    %11 = vector.broadcast %10 : vector<1x32xi32> to vector<8x32xi32>
    %12 = vector.broadcast %1 : vector<8x1xi32> to vector<8x32xi32>
    %13 = arith.cmpi eq, %11, %12 : vector<8x32xi32>
    %cst_4 = arith.constant 0xFF800000 : f32
    %14 = vector.broadcast %cst_4 : f32 to vector<8x32xf32>
    %15 = arith.select %13, %5, %14 : vector<8x32xi1>, vector<8x32xf32>
    %cst_5 = arith.constant dense<0xFF800000> : vector<8xf32>
    %16 = vector.multi_reduction <maximumf>, %15, %cst_5 [1] : vector<8x32xf32> to vector<8xf32>
    %17 = vector.shape_cast %16 : vector<8xf32> to vector<8x1xf32>
    %18 = arith.subf %9, %17 : vector<8x1xf32>
    %cst_6 = arith.constant 0.000000e+00 : f32
    %19 = vector.broadcast %cst_6 : f32 to vector<8x1xf32>
    %20 = arith.subf %19, %18 : vector<8x1xf32>
    %21 = math.exp %20 : vector<8x1xf32>
    %cst_7 = arith.constant 1.000000e+00 : f32
    %22 = vector.broadcast %cst_7 : f32 to vector<8x1xf32>
    %23 = arith.subf %22, %21 : vector<8x1xf32>
    %cst_8 = arith.constant 0.000000e+00 : f32
    %24 = vector.broadcast %cst_8 : f32 to vector<8x1xf32>
    %25 = arith.maximumf %23, %24 : vector<8x1xf32>
    %26 = arith.mulf %25, %25 : vector<8x1xf32>
    %cst_9 = arith.constant 1.000000e+00 : f32
    %27 = vector.broadcast %cst_9 : f32 to vector<8x1xf32>
    %28 = arith.mulf %27, %26 : vector<8x1xf32>
    %29 = arith.mulf %28, %18 : vector<8x1xf32>
    %30 = tpu.iota {dimensions = array<i32: 0>} : vector<8x1xi32>
    %c8_i32 = arith.constant 8 : i32
    %31 = arith.muli %arg0, %c8_i32 : i32
    %32 = vector.broadcast %31 : i32 to vector<8x1xi32>
    %33 = arith.addi %30, %32 : vector<8x1xi32>
    %c16_i32 = arith.constant 16 : i32
    %34 = vector.broadcast %c16_i32 : i32 to vector<8x1xi32>
    %35 = arith.cmpi slt, %33, %34 : vector<8x1xi32>
    %cst_10 = arith.constant 0.000000e+00 : f32
    %36 = vector.broadcast %cst_10 : f32 to vector<8x1xf32>
    %37 = arith.select %35, %29, %36 : vector<8x1xi1>, vector<8x1xf32>
    %38 = vector.shape_cast %37 : vector<8x1xf32> to vector<1x8x1xf32>
    %cst_11 = arith.constant dense<0.000000e+00> : vector<1xf32>
    %39 = vector.multi_reduction <add>, %38, %cst_11 [1, 2] : vector<1x8x1xf32> to vector<1xf32>
    %40 = vector.shape_cast %39 : vector<1xf32> to vector<1x1x1xf32>
    %41 = vector.extract %40[0, 0, 0] : f32 from vector<1x1x1xf32>
    %42 = vector.broadcast %41 : f32 to vector<1x1xf32>
    %43 = vector.shape_cast %42 : vector<1x1xf32> to vector<1x1x1xf32>
    %44 = vector.broadcast %43 : vector<1x1x1xf32> to vector<1x8x128xf32>
    %c0_12 = arith.constant 0 : index
    %c0_13 = arith.constant 0 : index
    %c0_14 = arith.constant 0 : index
    %45 = vector.load %arg3[%c0_12, %c0_13, %c0_14] : memref<1x8x128xf32, #tpu.memory_space<vmem>>, vector<1x8x128xf32>
    tpu.vector_store %arg3[%c0_12, %c0_13, %c0_14], %44 {strides = array<i32>} : memref<1x8x128xf32, #tpu.memory_space<vmem>>, vector<1x8x128xf32>,
    return
  }
  func.func @transform_0(%arg0: i32) -> (i32, i32) {
    %c0_i32 = arith.constant 0 : i32
    %c0_i32_0 = arith.constant 0 : i32
    return %arg0, %c0_i32 : i32, i32
  }
  func.func @transform_1(%arg0: i32) -> (i32, i32) {
    %c0_i32 = arith.constant 0 : i32
    %c0_i32_0 = arith.constant 0 : i32
    return %arg0, %c0_i32 : i32, i32
  }
  func.func @transform_2(%arg0: i32) -> (i32, i32, i32) {
    %c0_i32 = arith.constant 0 : i32
    %c0_i32_0 = arith.constant 0 : i32
    %c0_i32_1 = arith.constant 0 : i32
    return %arg0, %c0_i32, %c0_i32_0 : i32, i32, i32
  }
}

</mosaic_0001>

<llo_original>
// kernel: tpu_custom_call.1
$region0: #{tpu_custom_call.1}
  #allocation0 [shape = 'u32[]', space=smem, size = 0x4, offset = 0x4, fixed_abs, tag = 'smem constant byte address 0x4 - core index']
  #allocation1 [shape = 'u32[144,128]{1,0:T(1,128)}', space=vmem, size = 0x12000, scoped, tag = 'internal scratch']
  %s0 = inlined_call_operand.vmem [shape: f32[16,32], index: 0, kind: input, shape index: {}]
  %s1 = inlined_call_operand.vmem [shape: s32[16,1], index: 1, kind: input, shape index: {}]
  %s2 = inlined_call_operand.hbm [shape: f32[2,8,128], index: 2, kind: output, shape index: {}]
  %s3 = sld [smem:[#allocation0]]
  $region41: #{tpu_custom_call.1} parent=0
    _
  %s5 = ssub.s32 1, %s3
  %s6 = scalar_select 0, %s5, %s3
  $region1: #{tpu_custom_call.1} parent=0
    #allocation2 [shape = 'u8[8192]{0}', space=vmem, size = 0x2000, scoped, tag = 'output window, operand 0']
    #allocation3 [shape = 's32[2]{0}', space=sflag, size = 0x8, scoped, tag = 'scoped memory for tpu_custom_call.1']
    %7 = vsyncpa [#allocation3], 0
    %s8 = scalar_lea.sflag [#allocation3], 1
    %9 = vsyncpa %s8, 0
    loop: start=0, step=1, limit=4
    $region2: #{tpu_custom_call.1} parent=1 // loop_pre_header
      _
    $region3: #{tpu_custom_call.1} parent=1 // loop_header
      %s11 = sphi 0, %s15
      %p12 = scmp.ge.s32.totalorder %s11, 4
      %s21 = sphi 0, %s23
      %s24 = sphi 0, %s21
      %s25 = sphi 0, %s24
      %s41 = sphi 0, %s25
      %s47 = sphi 0, %s49
      %s50 = sphi 0, %s47
      %s51 = sphi 0, %s50
      %s67 = sphi 0, %s51
      %s73 = sphi 0, %s75
      %s76 = sphi 0, %s73
      %s77 = sphi 0, %s76
      %s93 = sphi 0, %s77
    $region4: #{tpu_custom_call.1} parent=1 // loop_header_branch
      %14 = sbr.rel (%p12) target = $region8
    $region5: #{tpu_custom_call.1} parent=1 // loop_body
      %s16 = ssub.s32 %s11, 1
      %s17 = ssub.s32 %s11, 2
      %s18 = sadd.s32 %s11, 1
      %s19 = ssub.s32 %s11, %s18
      %p20 = scmp.eq.s32.totalorder %s19, 0
      %s22 = sadd.s32 %s21, 1
      %s23 = scalar_select %p20, %s21, %s22
      %p26 = pneg %p20
      %p27 = scmp.eq.s32.totalorder %s11, 1
      %p28 = por %p26, %p27
      %p29 = scmp.ne.s32.totalorder %s21, %s24
      %p30 = scmp.eq.s32.totalorder %s11, 0
      %p31 = por %p29, %p30
      %p32 = scmp.ne.s32.totalorder %s21, %s24
      %p33 = scmp.eq.s32.totalorder %s16, 1
      %p34 = por %p32, %p33
      %p35 = scmp.ne.s32.totalorder %s24, %s25
      %p36 = scmp.eq.s32.totalorder %s16, 0
      %p37 = por %p35, %p36
      %p38 = scmp.ne.s32.totalorder %s24, %s25
      %p39 = scmp.eq.s32.totalorder %s17, 1
      %p40 = por %p38, %p39
      %p42 = scmp.ne.s32.totalorder %s25, %s41
      %p43 = scmp.eq.s32.totalorder %s17, 0
      %p44 = por %p42, %p43
      %s45 = ssub.s32 %s11, %s18
      %p46 = scmp.eq.s32.totalorder %s45, 0
      %s48 = sadd.s32 %s47, 1
      %s49 = scalar_select %p46, %s47, %s48
      %p52 = pneg %p46
      %p53 = scmp.eq.s32.totalorder %s11, 1
      %p54 = por %p52, %p53
      %p55 = scmp.ne.s32.totalorder %s47, %s50
      %p56 = scmp.eq.s32.totalorder %s11, 0
      %p57 = por %p55, %p56
      %p58 = scmp.ne.s32.totalorder %s47, %s50
      %p59 = scmp.eq.s32.totalorder %s16, 1
      %p60 = por %p58, %p59
      %p61 = scmp.ne.s32.totalorder %s50, %s51
      %p62 = scmp.eq.s32.totalorder %s16, 0
      %p63 = por %p61, %p62
      %p64 = scmp.ne.s32.totalorder %s50, %s51
      %p65 = scmp.eq.s32.totalorder %s17, 1
      %p66 = por %p64, %p65
      %p68 = scmp.ne.s32.totalorder %s51, %s67
      %p69 = scmp.eq.s32.totalorder %s17, 0
      %p70 = por %p68, %p69
      %s71 = ssub.s32 %s11, %s18
      %p72 = scmp.eq.s32.totalorder %s71, 0
      %s74 = sadd.s32 %s73, 1
      %s75 = scalar_select %p72, %s73, %s74
      %p78 = pneg %p72
      %p79 = scmp.eq.s32.totalorder %s11, 1
      %p80 = por %p78, %p79
      %p81 = scmp.ne.s32.totalorder %s73, %s76
      %p82 = scmp.eq.s32.totalorder %s11, 0
      %p83 = por %p81, %p82
      %p84 = scmp.ne.s32.totalorder %s73, %s76
      %p85 = scmp.eq.s32.totalorder %s16, 1
      %p86 = por %p84, %p85
      %p87 = scmp.ne.s32.totalorder %s76, %s77
      %p88 = scmp.eq.s32.totalorder %s16, 0
      %p89 = por %p87, %p88
      %p90 = scmp.ne.s32.totalorder %s76, %s77
      %p91 = scmp.eq.s32.totalorder %s17, 1
      %p92 = por %p90, %p91
      %p94 = scmp.ne.s32.totalorder %s77, %s93
      %p95 = scmp.eq.s32.totalorder %s17, 0
      %p96 = por %p94, %p95
      %p97 = scmp.le.s32.totalorder 1, %s11
      %p98 = scmp.lt.s32.totalorder %s11, 3
      %p99 = pnand %p97, %p98
      %p100 = pneg %p99
      // Predicated region
      $region9: #{tpu_custom_call.1} parent=5 // pred_check
        _
      $region10: #{tpu_custom_call.1} parent=5 // pred_check_branch
        %102 = sbr.rel (%p99) target = $region12
      $region11: #{tpu_custom_call.1} parent=5 // pred_region
        %s103 = ssub.s32 %s11, 1
      $region12: #{tpu_custom_call.1} parent=5 // pred_fallthru
        _
      %p104 = scmp.lt.s32.totalorder %s11, 2
      // Predicated region
      $region13: #{tpu_custom_call.1} parent=5 // pred_check
        %p105 = pneg %p104
      $region14: #{tpu_custom_call.1} parent=5 // pred_check_branch
        %107 = sbr.rel (%p105) target = $region16
      $region15: #{tpu_custom_call.1} parent=5 // pred_region
        // Predicated region
        $region17: #{tpu_custom_call.1} parent=15 // pred_check
          %p108 = pneg %p31
        $region18: #{tpu_custom_call.1} parent=15 // pred_check_branch
          %110 = sbr.rel (%p108) target = $region20
        $region19: #{tpu_custom_call.1} parent=15 // pred_region
          %p111 = scmp.lt.s32.totalorder %s11, 1
          %s112 = scalar_select %p111, %s11, 1
          %s113 = smul.addr %s112, 8
          %s114 = scalar_lea.vmem %s0, %s113
        $region20: #{tpu_custom_call.1} parent=15 // pred_fallthru
          _
        // Predicated region
        $region21: #{tpu_custom_call.1} parent=15 // pred_check
          %p115 = pneg %p57
        $region22: #{tpu_custom_call.1} parent=15 // pred_check_branch
          %117 = sbr.rel (%p115) target = $region24
        $region23: #{tpu_custom_call.1} parent=15 // pred_region
          %p118 = scmp.lt.s32.totalorder %s11, 1
          %s119 = scalar_select %p118, %s11, 1
          %s120 = smul.addr %s119, 8
          %s121 = scalar_lea.vmem %s1, %s120
        $region24: #{tpu_custom_call.1} parent=15 // pred_fallthru
          _
      $region16: #{tpu_custom_call.1} parent=5 // pred_fallthru
        _
      %p122 = scmp.le.s32.totalorder 1, %s11
      %p123 = scmp.lt.s32.totalorder %s11, 3
      %p124 = pnand %p122, %p123
      %p125 = pneg %p124
      // Predicated region
      $region25: #{tpu_custom_call.1} parent=5 // pred_check
        _
      $region26: #{tpu_custom_call.1} parent=5 // pred_check_branch
        %127 = sbr.rel (%p124) target = $region28
      $region27: #{tpu_custom_call.1} parent=5 // pred_region
        %s128 = ssub.s32 %s11, 1
        %p129 = scmp.lt.s32.totalorder %s16, 1
        %s130 = scalar_select %p129, %s16, 1
        %s131 = smul.addr %s130, 8
        %s132 = scalar_lea.vmem %s0, %s131
        %p133 = pneg %p37
        %p134 = pneg %p34
        %p135 = scmp.lt.s32.totalorder %s16, 1
        %s136 = scalar_select %p135, %s16, 1
        %s137 = smul.addr %s136, 8
        %s138 = scalar_lea.vmem %s1, %s137
        %p139 = pneg %p63
        %p140 = pneg %p60
        %p141 = pneg %p89
        %p142 = pneg %p86
        %s143 = sand.u32 %s76, 1
        %s144 = scalar_lea.sflag [#allocation3], %s143
        %s145 = sand.u32 %s76, 1
        %s146 = smul.addr %s145, 8
        %s147 = scalar_lea.vmem [#allocation2], %s146
        %p148 = scmp.lt.s32.totalorder %s16, 1
        %s149 = scalar_select %p148, %s16, 1
        %s150 = smul.addr %s149, 8
        %s151 = scalar_lea.vmem %s0, %s150
        %p152 = scmp.lt.s32.totalorder %s16, 1
        %s153 = scalar_select %p152, %s16, 1
        %s154 = smul.addr %s153, 8
        %s155 = scalar_lea.vmem %s1, %s154
        %v156 = vld [vmem:[%s151] sm:$0xff]
        %v157 = vld [vmem:[%s155] sm:$0xff]
        %vm158 = vcmask 261120
        %v159 = vsel %vm158, %v156, -inf
        %160 = vmax.xlane.f32.xlu0 %v159
        %v161 = vpop.xlane.xlu0 %160
        %v162 = vsub.f32 %v156, %v161
        %v163 = vmul.f32 %v162, 1.442695
        %v164 = vpow.pop %v163
        %v165 = vsel %vm158, %v164, 0.0
        %166 = vadd.xlane.f32.xlu0 %v165
        %v167 = vpop.xlane.xlu0 %166
        %v168 = vlog2.pop %v167
        %v169 = vmul.f32 %v168, 0.6931472
        %v170 = vlaneseq
        %v171 = vand.u32 %v170, 127
        %172 = vset.pattern.permute.xlu0 0
        %173 = vperm.xlu0 %172, %v157
        %v174 = vpop.permute.xlu0 %173
        %vm175 = vcmp.eq.s32.totalorder %v171, %v174
        %v176 = vsel %vm175, %v162, -inf
        %v177 = vsel %vm158, %v176, -inf
        %178 = vmax.xlane.f32.xlu0 %v177
        %v179 = vpop.xlane.xlu0 %178
        %v180 = vsub.f32 %v169, %v179
        %v181 = vsub.f32 0.0, %v180
        %v182 = vmul.f32 %v181, 1.442695
        %v183 = vpow.pop %v182
        %v184 = vsub.f32 1.0, %v183
        %v185 = vmax.f32 %v184, 0.0
        %v186 = vmul.f32 %v185, %v185
        %v187 = vmul.f32 %v186, %v180
        %v188 = vlaneseq
        %v189 = vshrl.u32 %v188, 7
        %s190 = smul.u32 %s16, 8
        %v191 = vstv %s190
        %v192 = vadd.s32 %v189, %v191
        %vm193 = vcmp.lt.s32.totalorder %v192, 16
        %v194 = vsel %vm193, %v187, 0.0
        %vm195 = vcmask 7168
        %v196 = vsel %vm195, %v194, 0.0
        %197 = vadd.xlane.f32.xlu0 %v196
        %v198 = vpop.xlane.xlu0 %197
        %v199 = vrot.slane %v198, 4
        %v200 = vadd.f32 %v198, %v199
        %v201 = vrot.slane %v200, 2
        %v202 = vadd.f32 %v200, %v201
        %v203 = vrot.slane %v202, 1
        %v204 = vadd.f32 %v202, %v203
        %s205 = vtos %v204
        %v206 = vstv %s205
        %207 = vst [vmem:[%s147] sm:$0xff] %v206
        %s208 = sand.u32 %s76, 1
        %s209 = scalar_lea.sflag [#allocation3], %s208
        %s210 = sand.u32 %s76, 1
        %s211 = smul.addr %s210, 8
        %s212 = scalar_lea.vmem [#allocation2], %s211
        // Predicated region
        $region29: #{tpu_custom_call.1} parent=27 // pred_check
          %p213 = pneg %p86
        $region30: #{tpu_custom_call.1} parent=27 // pred_check_branch
          %215 = sbr.rel (%p213) target = $region32
        $region31: #{tpu_custom_call.1} parent=27 // pred_region
          %s217 = ssub.s32 128, 128
          %218 = vsyncadd %s209, %s217
          %s219 = smul.addr %s16, 128
          %s220 = scalar_lea.hbm %s2, %s219
          %s222 = sshll.u32 %s212, 4
          %s223 = int_to_ptr.vmem [resolvable:$true] %s222
          %225 = dma.vmem_to_hbm [thread:$0]  %s223, 128, %s220, %s209
        $region32: #{tpu_custom_call.1} parent=27 // pred_fallthru
          _
      $region28: #{tpu_custom_call.1} parent=5 // pred_fallthru
        _
      %p226 = scmp.le.s32.totalorder 2, %s11
      // Predicated region
      $region33: #{tpu_custom_call.1} parent=5 // pred_check
        %p227 = pneg %p226
      $region34: #{tpu_custom_call.1} parent=5 // pred_check_branch
        %229 = sbr.rel (%p227) target = $region36
      $region35: #{tpu_custom_call.1} parent=5 // pred_region
        %s230 = ssub.s32 %s11, 2
        // Predicated region
        $region37: #{tpu_custom_call.1} parent=35 // pred_check
          %p231 = pneg %p92
        $region38: #{tpu_custom_call.1} parent=35 // pred_check_branch
          %233 = sbr.rel (%p231) target = $region40
        $region39: #{tpu_custom_call.1} parent=35 // pred_region
          %s234 = sand.u32 %s77, 1
          %s235 = scalar_lea.sflag [#allocation3], %s234
          %s236 = sand.u32 %s77, 1
          %s237 = smul.addr %s236, 8
          %s238 = scalar_lea.vmem [#allocation2], %s237
          %239 = dma.done %s235, 128
        $region40: #{tpu_custom_call.1} parent=35 // pred_fallthru
          _
      $region36: #{tpu_custom_call.1} parent=5 // pred_fallthru
        _
    $region6: #{tpu_custom_call.1} parent=1 // loop_footer
      %s15 = sadd.s32 1, %s11
    $region7: #{tpu_custom_call.1} parent=1 // loop_footer_branch
      %10 = sbr.rel target = $region3
    $region8: #{tpu_custom_call.1} parent=1 // loop_exit
      _
    %240 = vsyncpa [#allocation3], 1
    %s241 = scalar_lea.sflag [#allocation3], 1
    %242 = vsyncpa %s241, 1

</llo_original>
